<compile_context>
chip_gen: v5e
topology: v5e:2x2
jax: 0.10.0
libtpu: 0.0.40
codegen_flags: <defaults>
</compile_context>

<pallas_src>
import jax
import jax.numpy as jnp
from jax.experimental import pallas as pl
from jax.experimental.pallas import tpu as pltpu

LANES = 128           # full lane width -> unmasked vld/vst
TARGET_ROW_BLOCK = 4096  # 4096 x 128 f32 = 2 MiB per tile buffer


def _copy_kernel(x_ref, o_ref):
    # Straight tile copy: the "compute" of a reshape is pure memory movement.
    o_ref[...] = x_ref[...]


def my_model_forward(x):
    """Equivalent of MyModel().forward(x): reshape to (-1, 6)."""
    total = x.size
    assert total % 6 == 0, "input element count must be divisible by 6"
    rows = total // 6

    # ---- present a lane-dense slab to the kernel -------------------------
    flat = jnp.reshape(x, (-1,))

    # Number of 128-lane rows needed to hold the data.
    needed_rows = pl.cdiv(total, LANES)

    # Row-block: big (multi-MiB) when the input is big, otherwise the whole
    # (row-padded-to-8) extent. Always a multiple of 8 -> satisfies the
    # (8, 128) block constraint, never "block = entire huge array".
    if needed_rows >= TARGET_ROW_BLOCK:
        rb = TARGET_ROW_BLOCK
    else:
        rb = ((needed_rows + 7) // 8) * 8

    # Pad the row count up to a multiple of the row block so the grid is exact.
    slab_rows = pl.cdiv(needed_rows, rb) * rb
    padded_total = slab_rows * LANES
    pad = padded_total - total
    if pad:
        flat = jnp.pad(flat, (0, pad))
    slab = jnp.reshape(flat, (slab_rows, LANES))

    grid = (slab_rows // rb,)

    out_slab = pl.pallas_call(
        _copy_kernel,
        out_shape=jax.ShapeDtypeStruct((slab_rows, LANES), x.dtype),
        grid=grid,
        in_specs=[pl.BlockSpec((rb, LANES), lambda i: (i, 0))],
        out_specs=pl.BlockSpec((rb, LANES), lambda i: (i, 0)),
        compiler_params=pltpu.CompilerParams(
            dimension_semantics=("parallel",),
        ),
    )(slab)

    # ---- metadata-only reshape back to the module's output shape ---------
    out_flat = jnp.reshape(out_slab, (-1,))
    if pad:
        out_flat = out_flat[:total]
    return jnp.reshape(out_flat, (rows, 6))


if __name__ == "__main__":
    # Small NCHW-like input whose element count is divisible by 6:
    # batch=2, channels=3, spatial=8x8 -> 384 elements -> (64, 6) output.
    key = jax.random.PRNGKey(0)
    x = jax.random.normal(key, (2, 3, 8, 8), dtype=jnp.float32)

    out = my_model_forward(x)
    out = jax.block_until_ready(out)

    # Correctness check against the reference reshape semantics.
    ref = jnp.reshape(x, (-1, 6))
    assert out.shape == ref.shape == (64, 6), out.shape
    assert out.dtype == ref.dtype
    assert bool(jnp.array_equal(out, ref))

    print("KERNEL_OK")
</pallas_src>

<mosaic_0001>
module attributes {stable_mosaic.version = 11 : i64} {
  func.func @_copy_kernel(%arg0: i32, %arg1: memref<8x128xf32, #tpu.memory_space<vmem>>, %arg2: memref<8x128xf32, #tpu.memory_space<vmem>>) attributes {dimension_semantics = [#tpu.dimension_semantics<parallel>], iteration_bounds = array<i64: 1>, scalar_prefetch = 0 : i64, scratch_operands = 0 : i64, tpu.core_type = #tpu.core_type<tc>, window_params = [{transform_indices = @transform_0, window_bounds = array<i64: 8, 128>}, {transform_indices = @transform_1, window_bounds = array<i64: 8, 128>}]} {
    %c0 = arith.constant 0 : index
    %c0_0 = arith.constant 0 : index
    %0 = vector.load %arg1[%c0, %c0_0] : memref<8x128xf32, #tpu.memory_space<vmem>>, vector<8x128xf32>
    %c0_1 = arith.constant 0 : index
    %c0_2 = arith.constant 0 : index
    %1 = vector.load %arg2[%c0_1, %c0_2] : memref<8x128xf32, #tpu.memory_space<vmem>>, vector<8x128xf32>
    tpu.vector_store %arg2[%c0_1, %c0_2], %0 {strides = array<i32>} : memref<8x128xf32, #tpu.memory_space<vmem>>, vector<8x128xf32>,
    return
  }
  func.func @transform_0(%arg0: i32) -> (i32, i32) {
    %c0_i32 = arith.constant 0 : i32
    %c0_i32_0 = arith.constant 0 : i32
    return %arg0, %c0_i32 : i32, i32
  }
  func.func @transform_1(%arg0: i32) -> (i32, i32) {
    %c0_i32 = arith.constant 0 : i32
    %c0_i32_0 = arith.constant 0 : i32
    return %arg0, %c0_i32 : i32, i32
  }
}

</mosaic_0001>

<llo_original>
// kernel: tpu_custom_call.1
$region0: #{tpu_custom_call.1}
  #allocation0 [shape = 'u32[]', space=smem, size = 0x4, offset = 0x4, fixed_abs, tag = 'smem constant byte address 0x4 - core index']
  #allocation1 [shape = 'u32[72,128]{1,0:T(1,128)}', space=vmem, size = 0x9000, scoped, tag = 'internal scratch']
  %s0 = inlined_call_operand.hbm [shape: f32[8,128], index: 0, kind: input, shape index: {}]
  %s1 = inlined_call_operand.hbm [shape: f32[8,128], index: 1, kind: output, shape index: {}]
  %s2 = sld [smem:[#allocation0]]
  $region18: #{tpu_custom_call.1} parent=0
    _
  %s4 = ssub.s32 1, %s2
  %s5 = scalar_select 0, %s4, %s2
  $region1: #{tpu_custom_call.1} parent=0
    #allocation2 [shape = 'u8[4096]{0}', space=vmem, size = 0x1000, scoped, tag = 'input window, operand 0, single buffered']
    #allocation3 [shape = 's32[1]{0}', space=sflag, size = 0x4, scoped, tag = 'scoped memory for tpu_custom_call.1']
    #allocation4 [shape = 's32[1]{0}', space=sflag, size = 0x4, scoped, tag = 'scoped memory for tpu_custom_call.1']
    #allocation5 [shape = 'u8[4096]{0}', space=vmem, size = 0x1000, scoped, tag = 'output window, operand 0, single buffered']
    %6 = vsyncpa [#allocation3], 0
    %7 = vsyncpa [#allocation4], 0
    // Predicated region
    $region2: #{tpu_custom_call.1} parent=1 // pred_check
      _
    $region3: #{tpu_custom_call.1} parent=1 // pred_check_branch
      %9 = sbr.rel (0) target = $region5
    $region4: #{tpu_custom_call.1} parent=1 // pred_region
      %11 = vsyncadd [#allocation3], 0
      %s13 = sshll.u32 %s0, 4
      %s14 = int_to_ptr.hbm [resolvable:$true] %s13
      %s15 = sshll.u32 [#allocation2], 4
      %s16 = int_to_ptr.vmem [resolvable:$true] %s15
      %18 = dma.hbm_to_vmem [thread:$0]  %s14, 128, %s16, [#allocation3]
    $region5: #{tpu_custom_call.1} parent=1 // pred_fallthru
      _
    // Predicated region
    $region6: #{tpu_custom_call.1} parent=1 // pred_check
      _
    $region7: #{tpu_custom_call.1} parent=1 // pred_check_branch
      %20 = sbr.rel (0) target = $region9
    $region8: #{tpu_custom_call.1} parent=1 // pred_region
      %22 = dma.done [#allocation3], 128
    $region9: #{tpu_custom_call.1} parent=1 // pred_fallthru
      _
    %v23 = vld [vmem:[#allocation2] sm:$0xff]
    %24 = vst [vmem:[#allocation5] sm:$0xff] %v23
    // Predicated region
    $region10: #{tpu_custom_call.1} parent=1 // pred_check
      _
    $region11: #{tpu_custom_call.1} parent=1 // pred_check_branch
      %26 = sbr.rel (0) target = $region13
    $region12: #{tpu_custom_call.1} parent=1 // pred_region
      %28 = vsyncadd [#allocation4], 0
      %s30 = sshll.u32 [#allocation5], 4
      %s31 = int_to_ptr.vmem [resolvable:$true] %s30
      %s32 = sshll.u32 %s1, 4
      %s33 = int_to_ptr.hbm [resolvable:$true] %s32
      %35 = dma.vmem_to_hbm [thread:$0]  %s31, 128, %s33, [#allocation4]
    $region13: #{tpu_custom_call.1} parent=1 // pred_fallthru
      _
    // Predicated region
    $region14: #{tpu_custom_call.1} parent=1 // pred_check
      _
    $region15: #{tpu_custom_call.1} parent=1 // pred_check_branch
      %37 = sbr.rel (0) target = $region17
    $region16: #{tpu_custom_call.1} parent=1 // pred_region
      %39 = dma.done [#allocation4], 128
    $region17: #{tpu_custom_call.1} parent=1 // pred_fallthru
      _
    %40 = vsyncpa [#allocation3], 1
    %41 = vsyncpa [#allocation4], 1

</llo_original>
